<compile_context>
chip_gen: v7x
topology: tpu7x:2x2x1
jax: 0.10.0
libtpu: 0.0.40
codegen_flags: <defaults>
</compile_context>

<pallas_src>
import functools

import jax
import jax.numpy as jnp
from jax.experimental import pallas as pl
from jax.experimental.pallas import tpu as pltpu


IN_FEATURES = 1152  # fixed by the module
LANE = 128


def _round_up(x, m):
    return (x + m - 1) // m * m


def _pick_batch_tile(B):
    """Batch tile: <=512 rows; for B>16 split at least 2 ways so both v7x TCs get work."""
    if B <= 16:
        return B  # single block == full array (always a legal block shape)
    return min(512, _round_up(pl.cdiv(B, 2), 16))


def _mrn_kernel(x_ref, w1_ref, b1_ref, w2_ref, b2_ref, w3_ref, b3_ref,
                wo_ref, bo_ref, out_ref):
    # 3 x (Linear + ReLU) + head Linear; bf16 MXU matmuls, f32 accumulation.
    x = x_ref[...].astype(jnp.bfloat16)  # no-op: features are stored bf16
    h = jnp.dot(x, w1_ref[...], preferred_element_type=jnp.float32)
    h = jnp.maximum(h + b1_ref[...], 0.0).astype(jnp.bfloat16)
    h = jnp.dot(h, w2_ref[...], preferred_element_type=jnp.float32)
    h = jnp.maximum(h + b2_ref[...], 0.0).astype(jnp.bfloat16)
    h = jnp.dot(h, w3_ref[...], preferred_element_type=jnp.float32)
    h = jnp.maximum(h + b3_ref[...], 0.0).astype(jnp.bfloat16)
    out = jnp.dot(h, wo_ref[...], preferred_element_type=jnp.float32)
    out_ref[...] = (out + bo_ref[...]).astype(out_ref.dtype)


@functools.partial(jax.jit, static_argnames=("task_id",))
def multi_relation_net_forward(feature, params, task_id):
    """feature: [B, 1152] (bf16 preferred; f32 accepted). Returns lane-padded bf16
    logits [B, C_pad]; columns >= num_classes[task_id] are exact zeros.

    task_id is static (one compiled kernel per task, mirroring the per-task nn.Linear
    structure). Per-task weights are selected inside the BlockSpec index_maps, so the
    stacked (n_tasks, ...) params are DMA'd straight from HBM with no XLA slice pass.
    """
    w1, b1 = params["w1"], params["b1"]          # (T, 1152, H) bf16 / (T, 1, H) f32
    w2, b2 = params["w2"], params["b2"]          # (T, H, H)    bf16 / (T, 1, H) f32
    w3, b3 = params["w3"], params["b3"]
    wo, bo = params["head_w"], params["head_b"]  # (T, H, Cp)   bf16 / (T, 1, Cp) f32

    B = feature.shape[0]
    H = w1.shape[2]
    C_pad = wo.shape[2]

    tb = _pick_batch_tile(B)
    grid = (pl.cdiv(B, tb),)

    # Task selection via the BlockSpec: squeezed leading task axis, constant index.
    task_idx = lambda i: (task_id, 0, 0)
    # Residents need no double buffer (constant index_map) -> halve their VMEM.
    resident = lambda shape: pl.BlockSpec(
        (None,) + shape, task_idx, pipeline_mode=pl.Buffered(1))

    per_task_w_bytes = (2 * (IN_FEATURES * H + 2 * H * H + H * C_pad)
                        + 4 * (3 * H + C_pad))
    feat_tile_bytes = tb * IN_FEATURES * feature.dtype.itemsize
    out_tile_bytes = tb * C_pad * 2
    vmem_limit = int(min(
        48 << 20,  # headroom inside v7x's 64 MiB physical VMEM
        2 * feat_tile_bytes + 2 * out_tile_bytes + per_task_w_bytes + (8 << 20)))

    flops = 2 * B * (IN_FEATURES * H + 2 * H * H + H * C_pad)
    bytes_accessed = (B * IN_FEATURES * feature.dtype.itemsize
                      + per_task_w_bytes + B * C_pad * 2)

    return pl.pallas_call(
        _mrn_kernel,
        out_shape=jax.ShapeDtypeStruct((B, C_pad), jnp.bfloat16),
        grid=grid,
        in_specs=[
            pl.BlockSpec((tb, IN_FEATURES), lambda i: (i, 0)),   # feature tiles (bf16)
            resident((IN_FEATURES, H)),                          # w1
            resident((1, H)),                                    # b1
            resident((H, H)),                                    # w2
            resident((1, H)),                                    # b2
            resident((H, H)),                                    # w3
            resident((1, H)),                                    # b3
            resident((H, C_pad)),                                # head_w
            resident((1, C_pad)),                                # head_b
        ],
        out_specs=pl.BlockSpec((tb, C_pad), lambda i: (i, 0)),
        compiler_params=pltpu.CompilerParams(
            dimension_semantics=("parallel",),
            vmem_limit_bytes=vmem_limit),
        cost_estimate=pl.CostEstimate(
            flops=flops, transcendentals=0, bytes_accessed=bytes_accessed),
    )(feature, w1, b1, w2, b2, w3, b3, wo, bo)


def init_params(key, hidden_feature, task_classes):
    """Deterministic init mirroring nn.Linear defaults (uniform +/- 1/sqrt(fan_in)).

    Per-task weights stacked on a leading task axis, stored (in, out) so the kernel
    does plain MXU matmuls. Weights are cast to bf16 once here (storage format);
    biases stay f32. Heads are generated at the lane-padded width C_pad =
    round_up(max(C), 128) and masked so that for task t, columns >= task_classes[t]
    are exactly zero (padded logits come out as exact zeros).
    """
    n_tasks = len(task_classes)
    c_pad = _round_up(max(task_classes), LANE)
    H = hidden_feature
    keys = jax.random.split(key, 8)

    def u(k, shape, fan_in):
        bound = 1.0 / jnp.sqrt(jnp.float32(fan_in))
        return jax.random.uniform(k, shape, jnp.float32, -bound, bound)

    col_mask = (jnp.arange(c_pad)[None, :]
                < jnp.asarray(task_classes)[:, None]).astype(jnp.float32)  # (T, Cp)
    head_w = u(keys[6], (n_tasks, H, c_pad), H) * col_mask[:, None, :]
    head_b = u(keys[7], (n_tasks, 1, c_pad), H) * col_mask[:, None, :]

    return {
        "w1": u(keys[0], (n_tasks, IN_FEATURES, H), IN_FEATURES).astype(jnp.bfloat16),
        "b1": u(keys[1], (n_tasks, 1, H), IN_FEATURES),
        "w2": u(keys[2], (n_tasks, H, H), H).astype(jnp.bfloat16),
        "b2": u(keys[3], (n_tasks, 1, H), H),
        "w3": u(keys[4], (n_tasks, H, H), H).astype(jnp.bfloat16),
        "b3": u(keys[5], (n_tasks, 1, H), H),
        "head_w": head_w.astype(jnp.bfloat16),
        "head_b": head_b,
    }


def reference_forward(feature, params, task_id, num_classes):
    """Pure-JAX reference matching the kernel's bf16-stream / f32-accum numerics."""
    h = feature.astype(jnp.bfloat16)
    for wk, bk in (("w1", "b1"), ("w2", "b2"), ("w3", "b3")):
        w = params[wk][task_id]
        b = params[bk][task_id]
        h = jnp.dot(h, w, preferred_element_type=jnp.float32) + b
        h = jnp.maximum(h, 0.0).astype(jnp.bfloat16)
    w = params["head_w"][task_id]
    b = params["head_b"][task_id]
    out = (jnp.dot(h, w, preferred_element_type=jnp.float32) + b).astype(jnp.bfloat16)
    return out[:, :num_classes]


if __name__ == "__main__":
    hidden_feature = 128
    task_classes = [10, 7]   # two tasks with different head widths
    batch = 8

    key = jax.random.PRNGKey(0)
    k_feat, k_param = jax.random.split(key)

    # Features are *stored* bf16 (what lands in HBM), not pre-cast inside the graph.
    feature = jax.random.normal(
        k_feat, (batch, IN_FEATURES), jnp.float32).astype(jnp.bfloat16)
    params = init_params(k_param, hidden_feature, task_classes)
    c_pad = params["head_w"].shape[-1]

    for tid, n_cls in enumerate(task_classes):
        out_padded = jax.block_until_ready(
            multi_relation_net_forward(feature, params, tid))
        assert out_padded.shape == (batch, c_pad), out_padded.shape
        assert out_padded.dtype == jnp.bfloat16, out_padded.dtype
        # Padded lanes are exact zeros (zero-masked head weights/bias).
        assert bool(jnp.all(out_padded[:, n_cls:] == 0))

        # Consumer-side slice (kept out of the kernel's hot path per perf review).
        out = out_padded[:, :n_cls].astype(jnp.float32)
        ref = reference_forward(feature, params, tid, n_cls).astype(jnp.float32)
        assert out.shape == (batch, n_cls), out.shape
        assert jnp.allclose(out, ref, atol=2e-2, rtol=2e-2), \
            float(jnp.max(jnp.abs(out - ref)))

    print("KERNEL_OK")
</pallas_src>

<mosaic_0001>
module attributes {stable_mosaic.version = 11 : i64} {
  func.func @_mrn_kernel(%arg0: i32, %arg1: memref<8x1152xbf16, #tpu.memory_space<vmem>>, %arg2: memref<1x1152x128xbf16, #tpu.memory_space<vmem>>, %arg3: memref<1x1x128xf32, #tpu.memory_space<vmem>>, %arg4: memref<1x128x128xbf16, #tpu.memory_space<vmem>>, %arg5: memref<1x1x128xf32, #tpu.memory_space<vmem>>, %arg6: memref<1x128x128xbf16, #tpu.memory_space<vmem>>, %arg7: memref<1x1x128xf32, #tpu.memory_space<vmem>>, %arg8: memref<1x128x128xbf16, #tpu.memory_space<vmem>>, %arg9: memref<1x1x128xf32, #tpu.memory_space<vmem>>, %arg10: memref<8x128xbf16, #tpu.memory_space<vmem>>) attributes {dimension_semantics = [#tpu.dimension_semantics<parallel>], iteration_bounds = array<i64: 1>, scalar_prefetch = 0 : i64, scratch_operands = 0 : i64, tpu.core_type = #tpu.core_type<tc>, window_params = [{transform_indices = @transform_0, window_bounds = array<i64: 8, 1152>}, {pipeline_mode = #tpu.pipeline_mode<synchronous>, transform_indices = @transform_1, window_bounds = array<i64: 1, 1152, 128>}, {pipeline_mode = #tpu.pipeline_mode<synchronous>, transform_indices = @transform_2, window_bounds = array<i64: 1, 1, 128>}, {pipeline_mode = #tpu.pipeline_mode<synchronous>, transform_indices = @transform_3, window_bounds = array<i64: 1, 128, 128>}, {pipeline_mode = #tpu.pipeline_mode<synchronous>, transform_indices = @transform_4, window_bounds = array<i64: 1, 1, 128>}, {pipeline_mode = #tpu.pipeline_mode<synchronous>, transform_indices = @transform_5, window_bounds = array<i64: 1, 128, 128>}, {pipeline_mode = #tpu.pipeline_mode<synchronous>, transform_indices = @transform_6, window_bounds = array<i64: 1, 1, 128>}, {pipeline_mode = #tpu.pipeline_mode<synchronous>, transform_indices = @transform_7, window_bounds = array<i64: 1, 128, 128>}, {pipeline_mode = #tpu.pipeline_mode<synchronous>, transform_indices = @transform_8, window_bounds = array<i64: 1, 1, 128>}, {transform_indices = @transform_9, window_bounds = array<i64: 8, 128>}]} {
    %c0 = arith.constant 0 : index
    %c0_0 = arith.constant 0 : index
    %0 = vector.load %arg1[%c0, %c0_0] : memref<8x1152xbf16, #tpu.memory_space<vmem>>, vector<8x1152xbf16>
    %c0_1 = arith.constant 0 : index
    %c0_2 = arith.constant 0 : index
    %c0_3 = arith.constant 0 : index
    %1 = vector.load %arg2[%c0_1, %c0_2, %c0_3] : memref<1x1152x128xbf16, #tpu.memory_space<vmem>>, vector<1x1152x128xbf16>
    %2 = vector.shape_cast %1 : vector<1x1152x128xbf16> to vector<1152x128xbf16>
    %cst = arith.constant dense<0.000000e+00> : vector<8x128xf32>
    %3 = tpu.matmul %0, %2, %cst {dimension_numbers = #tpu.dot_dimension_numbers<[1], [0], [0], [1], [0, 0, 1, 1], [], []>} : vector<8x1152xbf16>, vector<1152x128xbf16>, vector<8x128xf32> -> vector<8x128xf32>
    %c0_4 = arith.constant 0 : index
    %c0_5 = arith.constant 0 : index
    %c0_6 = arith.constant 0 : index
    %4 = vector.load %arg3[%c0_4, %c0_5, %c0_6] : memref<1x1x128xf32, #tpu.memory_space<vmem>>, vector<1x1x128xf32>
    %5 = vector.shape_cast %4 : vector<1x1x128xf32> to vector<1x128xf32>
    %6 = vector.broadcast %5 : vector<1x128xf32> to vector<8x128xf32>
    %7 = arith.addf %3, %6 : vector<8x128xf32>
    %cst_7 = arith.constant 0.000000e+00 : f32
    %8 = vector.broadcast %cst_7 : f32 to vector<8x128xf32>
    %9 = arith.maximumf %7, %8 : vector<8x128xf32>
    %10 = arith.truncf %9 : vector<8x128xf32> to vector<8x128xbf16>
    %c0_8 = arith.constant 0 : index
    %c0_9 = arith.constant 0 : index
    %c0_10 = arith.constant 0 : index
    %11 = vector.load %arg4[%c0_8, %c0_9, %c0_10] : memref<1x128x128xbf16, #tpu.memory_space<vmem>>, vector<1x128x128xbf16>
    %12 = vector.shape_cast %11 : vector<1x128x128xbf16> to vector<128x128xbf16>
    %cst_11 = arith.constant dense<0.000000e+00> : vector<8x128xf32>
    %13 = tpu.matmul %10, %12, %cst_11 {dimension_numbers = #tpu.dot_dimension_numbers<[1], [0], [0], [1], [0, 0, 1, 1], [], []>} : vector<8x128xbf16>, vector<128x128xbf16>, vector<8x128xf32> -> vector<8x128xf32>
    %c0_12 = arith.constant 0 : index
    %c0_13 = arith.constant 0 : index
    %c0_14 = arith.constant 0 : index
    %14 = vector.load %arg5[%c0_12, %c0_13, %c0_14] : memref<1x1x128xf32, #tpu.memory_space<vmem>>, vector<1x1x128xf32>
    %15 = vector.shape_cast %14 : vector<1x1x128xf32> to vector<1x128xf32>
    %16 = vector.broadcast %15 : vector<1x128xf32> to vector<8x128xf32>
    %17 = arith.addf %13, %16 : vector<8x128xf32>
    %cst_15 = arith.constant 0.000000e+00 : f32
    %18 = vector.broadcast %cst_15 : f32 to vector<8x128xf32>
    %19 = arith.maximumf %17, %18 : vector<8x128xf32>
    %20 = arith.truncf %19 : vector<8x128xf32> to vector<8x128xbf16>
    %c0_16 = arith.constant 0 : index
    %c0_17 = arith.constant 0 : index
    %c0_18 = arith.constant 0 : index
    %21 = vector.load %arg6[%c0_16, %c0_17, %c0_18] : memref<1x128x128xbf16, #tpu.memory_space<vmem>>, vector<1x128x128xbf16>
    %22 = vector.shape_cast %21 : vector<1x128x128xbf16> to vector<128x128xbf16>
    %cst_19 = arith.constant dense<0.000000e+00> : vector<8x128xf32>
    %23 = tpu.matmul %20, %22, %cst_19 {dimension_numbers = #tpu.dot_dimension_numbers<[1], [0], [0], [1], [0, 0, 1, 1], [], []>} : vector<8x128xbf16>, vector<128x128xbf16>, vector<8x128xf32> -> vector<8x128xf32>
    %c0_20 = arith.constant 0 : index
    %c0_21 = arith.constant 0 : index
    %c0_22 = arith.constant 0 : index
    %24 = vector.load %arg7[%c0_20, %c0_21, %c0_22] : memref<1x1x128xf32, #tpu.memory_space<vmem>>, vector<1x1x128xf32>
    %25 = vector.shape_cast %24 : vector<1x1x128xf32> to vector<1x128xf32>
    %26 = vector.broadcast %25 : vector<1x128xf32> to vector<8x128xf32>
    %27 = arith.addf %23, %26 : vector<8x128xf32>
    %cst_23 = arith.constant 0.000000e+00 : f32
    %28 = vector.broadcast %cst_23 : f32 to vector<8x128xf32>
    %29 = arith.maximumf %27, %28 : vector<8x128xf32>
    %30 = arith.truncf %29 : vector<8x128xf32> to vector<8x128xbf16>
    %c0_24 = arith.constant 0 : index
    %c0_25 = arith.constant 0 : index
    %c0_26 = arith.constant 0 : index
    %31 = vector.load %arg8[%c0_24, %c0_25, %c0_26] : memref<1x128x128xbf16, #tpu.memory_space<vmem>>, vector<1x128x128xbf16>
    %32 = vector.shape_cast %31 : vector<1x128x128xbf16> to vector<128x128xbf16>
    %cst_27 = arith.constant dense<0.000000e+00> : vector<8x128xf32>
    %33 = tpu.matmul %30, %32, %cst_27 {dimension_numbers = #tpu.dot_dimension_numbers<[1], [0], [0], [1], [0, 0, 1, 1], [], []>} : vector<8x128xbf16>, vector<128x128xbf16>, vector<8x128xf32> -> vector<8x128xf32>
    %c0_28 = arith.constant 0 : index
    %c0_29 = arith.constant 0 : index
    %c0_30 = arith.constant 0 : index
    %34 = vector.load %arg9[%c0_28, %c0_29, %c0_30] : memref<1x1x128xf32, #tpu.memory_space<vmem>>, vector<1x1x128xf32>
    %35 = vector.shape_cast %34 : vector<1x1x128xf32> to vector<1x128xf32>
    %36 = vector.broadcast %35 : vector<1x128xf32> to vector<8x128xf32>
    %37 = arith.addf %33, %36 : vector<8x128xf32>
    %38 = arith.truncf %37 : vector<8x128xf32> to vector<8x128xbf16>
    %c0_31 = arith.constant 0 : index
    %c0_32 = arith.constant 0 : index
    %39 = vector.load %arg10[%c0_31, %c0_32] : memref<8x128xbf16, #tpu.memory_space<vmem>>, vector<8x128xbf16>
    tpu.vector_store %arg10[%c0_31, %c0_32], %38 {strides = array<i32>} : memref<8x128xbf16, #tpu.memory_space<vmem>>, vector<8x128xbf16>,
    return
  }
  func.func @transform_0(%arg0: i32) -> (i32, i32) {
    %c0_i32 = arith.constant 0 : i32
    %c0_i32_0 = arith.constant 0 : i32
    return %arg0, %c0_i32 : i32, i32
  }
  func.func @transform_1(%arg0: i32) -> (i32, i32, i32) {
    %c0_i32 = arith.constant 0 : i32
    %c0_i32_0 = arith.constant 0 : i32
    %c0_i32_1 = arith.constant 0 : i32
    %c0_i32_2 = arith.constant 0 : i32
    return %c0_i32, %c0_i32_0, %c0_i32_1 : i32, i32, i32
  }
  func.func @transform_2(%arg0: i32) -> (i32, i32, i32) {
    %c0_i32 = arith.constant 0 : i32
    %c0_i32_0 = arith.constant 0 : i32
    %c0_i32_1 = arith.constant 0 : i32
    %c0_i32_2 = arith.constant 0 : i32
    return %c0_i32, %c0_i32_0, %c0_i32_1 : i32, i32, i32
  }
  func.func @transform_3(%arg0: i32) -> (i32, i32, i32) {
    %c0_i32 = arith.constant 0 : i32
    %c0_i32_0 = arith.constant 0 : i32
    %c0_i32_1 = arith.constant 0 : i32
    %c0_i32_2 = arith.constant 0 : i32
    return %c0_i32, %c0_i32_0, %c0_i32_1 : i32, i32, i32
  }
  func.func @transform_4(%arg0: i32) -> (i32, i32, i32) {
    %c0_i32 = arith.constant 0 : i32
    %c0_i32_0 = arith.constant 0 : i32
    %c0_i32_1 = arith.constant 0 : i32
    %c0_i32_2 = arith.constant 0 : i32
    return %c0_i32, %c0_i32_0, %c0_i32_1 : i32, i32, i32
  }
  func.func @transform_5(%arg0: i32) -> (i32, i32, i32) {
    %c0_i32 = arith.constant 0 : i32
    %c0_i32_0 = arith.constant 0 : i32
    %c0_i32_1 = arith.constant 0 : i32
    %c0_i32_2 = arith.constant 0 : i32
    return %c0_i32, %c0_i32_0, %c0_i32_1 : i32, i32, i32
  }
  func.func @transform_6(%arg0: i32) -> (i32, i32, i32) {
    %c0_i32 = arith.constant 0 : i32
    %c0_i32_0 = arith.constant 0 : i32
    %c0_i32_1 = arith.constant 0 : i32
    %c0_i32_2 = arith.constant 0 : i32
    return %c0_i32, %c0_i32_0, %c0_i32_1 : i32, i32, i32
  }
  func.func @transform_7(%arg0: i32) -> (i32, i32, i32) {
    %c0_i32 = arith.constant 0 : i32
    %c0_i32_0 = arith.constant 0 : i32
    %c0_i32_1 = arith.constant 0 : i32
    %c0_i32_2 = arith.constant 0 : i32
    return %c0_i32, %c0_i32_0, %c0_i32_1 : i32, i32, i32
  }
  func.func @transform_8(%arg0: i32) -> (i32, i32, i32) {
    %c0_i32 = arith.constant 0 : i32
    %c0_i32_0 = arith.constant 0 : i32
    %c0_i32_1 = arith.constant 0 : i32
    %c0_i32_2 = arith.constant 0 : i32
    return %c0_i32, %c0_i32_0, %c0_i32_1 : i32, i32, i32
  }
  func.func @transform_9(%arg0: i32) -> (i32, i32) {
    %c0_i32 = arith.constant 0 : i32
    %c0_i32_0 = arith.constant 0 : i32
    return %arg0, %c0_i32 : i32, i32
  }
}

</mosaic_0001>

<llo_original>
// kernel: multi_relation_net_forward.1
$region0: #{multi_relation_net_forward.1}
  #allocation0 [shape = 'u32[]', space=smem, size = 0x4, offset = 0x4, fixed_abs, tag = 'smem constant byte address 0x4 - core index']
  #allocation1 [shape = 'u32[144,128]{1,0:T(1,128)}', space=vmem, size = 0x12000, scoped, tag = 'internal scratch']
  %s0 = inlined_call_operand.hbm [shape: bf16[8,1152], index: 0, kind: input, shape index: {}]
  %s1 = inlined_call_operand.hbm [shape: bf16[2,1152,128], index: 1, kind: input, shape index: {}]
  %s2 = inlined_call_operand.vmem [shape: f32[2,1,128], index: 2, kind: input, shape index: {}]
  %s3 = inlined_call_operand.hbm [shape: bf16[2,128,128], index: 3, kind: input, shape index: {}]
  %s4 = inlined_call_operand.vmem [shape: f32[2,1,128], index: 4, kind: input, shape index: {}]
  %s5 = inlined_call_operand.hbm [shape: bf16[2,128,128], index: 5, kind: input, shape index: {}]
  %s6 = inlined_call_operand.vmem [shape: f32[2,1,128], index: 6, kind: input, shape index: {}]
  %s7 = inlined_call_operand.hbm [shape: bf16[2,128,128], index: 7, kind: input, shape index: {}]
  %s8 = inlined_call_operand.vmem [shape: f32[2,1,128], index: 8, kind: input, shape index: {}]
  %s9 = inlined_call_operand.hbm [shape: bf16[8,128], index: 9, kind: output, shape index: {}]
  %s10 = sld [smem:[#allocation0]]
  $region66: #{multi_relation_net_forward.1} parent=0
    _
  %s12 = ssub.s32 1, %s10
  %s13 = scalar_select 0, %s12, %s10
  $region1: #{multi_relation_net_forward.1} parent=0
    #allocation2 [shape = 'u8[18432]{0}', space=vmem, size = 0x4800, scoped, tag = 'input window, operand 0, single buffered']
    #allocation3 [shape = 's32[1]{0}', space=sflag, size = 0x4, scoped, tag = 'scoped memory for multi_relation_net_forward.1']
    #allocation4 [shape = 's32[1]{0}', space=sflag, size = 0x4, scoped, tag = 'scoped memory for multi_relation_net_forward.1']
    #allocation5 [shape = 'u8[294912]{0}', space=vmem, size = 0x48000, scoped, tag = 'input window, operand 1, single buffered']
    #allocation6 [shape = 's32[1]{0}', space=sflag, size = 0x4, scoped, tag = 'scoped memory for multi_relation_net_forward.1']
    #allocation7 [shape = 'u8[32768]{0}', space=vmem, size = 0x8000, scoped, tag = 'input window, operand 3, single buffered']
    #allocation8 [shape = 'u8[32768]{0}', space=vmem, size = 0x8000, scoped, tag = 'input window, operand 5, single buffered']
    #allocation9 [shape = 's32[1]{0}', space=sflag, size = 0x4, scoped, tag = 'scoped memory for multi_relation_net_forward.1']
    #allocation10 [shape = 'u8[32768]{0}', space=vmem, size = 0x8000, scoped, tag = 'input window, operand 7, single buffered']
    #allocation11 [shape = 'u8[2048]{0}', space=vmem, size = 0x800, scoped, tag = 'output window, operand 0, single buffered']
    %14 = vsyncpa [#allocation3], 0
    %15 = vsyncpa [#allocation6], 0
    %16 = vsyncpa [#allocation9], 0
    %17 = vsyncpa [#allocation4], 0
    // Predicated region
    $region2: #{multi_relation_net_forward.1} parent=1 // pred_check
      _
    $region3: #{multi_relation_net_forward.1} parent=1 // pred_check_branch
      %19 = sbr.rel (0) target = $region5
    $region4: #{multi_relation_net_forward.1} parent=1 // pred_region
      %s21 = ssub.s32 576, 576
      %22 = vsyncadd [#allocation3], %s21
      %s24 = sshll.u32 [#allocation2], 4
      %s25 = int_to_ptr.vmem [resolvable:$true] %s24
      %27 = dma.hbm_to_vmem [thread:$0]  %s0, 576, %s25, [#allocation3]
    $region5: #{multi_relation_net_forward.1} parent=1 // pred_fallthru
      _
    // Predicated region
    $region6: #{multi_relation_net_forward.1} parent=1 // pred_check
      _
    $region7: #{multi_relation_net_forward.1} parent=1 // pred_check_branch
      %29 = sbr.rel (0) target = $region9
    $region8: #{multi_relation_net_forward.1} parent=1 // pred_region
      %s31 = ssub.s32 9216, 9216
      %32 = vsyncadd [#allocation6], %s31
      %s33 = sshll.u32 [#allocation5], 4
      %s34 = int_to_ptr.vmem [resolvable:$true] %s33
      %39 = dma.hbm_to_vmem [thread:$0]  %s1, 9216, %s34, [#allocation6], 64, 64, 4
    $region9: #{multi_relation_net_forward.1} parent=1 // pred_fallthru
      _
    // Predicated region
    $region10: #{multi_relation_net_forward.1} parent=1 // pred_check
      _
    $region11: #{multi_relation_net_forward.1} parent=1 // pred_check_branch
      %41 = sbr.rel (0) target = $region13
    $region12: #{multi_relation_net_forward.1} parent=1 // pred_region
      _
    $region13: #{multi_relation_net_forward.1} parent=1 // pred_fallthru
      _
    // Predicated region
    $region14: #{multi_relation_net_forward.1} parent=1 // pred_check
      _
    $region15: #{multi_relation_net_forward.1} parent=1 // pred_check_branch
      %43 = sbr.rel (0) target = $region17
    $region16: #{multi_relation_net_forward.1} parent=1 // pred_region
      %s45 = ssub.s32 1024, 1024
      %46 = vsyncadd [#allocation6], %s45
      %s47 = sshll.u32 [#allocation7], 4
      %s48 = int_to_ptr.vmem [resolvable:$true] %s47
      %53 = dma.hbm_to_vmem [thread:$0]  %s3, 1024, %s48, [#allocation6], 64, 64, 4
    $region17: #{multi_relation_net_forward.1} parent=1 // pred_fallthru
      _
    // Predicated region
    $region18: #{multi_relation_net_forward.1} parent=1 // pred_check
      _
    $region19: #{multi_relation_net_forward.1} parent=1 // pred_check_branch
      %55 = sbr.rel (0) target = $region21
    $region20: #{multi_relation_net_forward.1} parent=1 // pred_region
      _
    $region21: #{multi_relation_net_forward.1} parent=1 // pred_fallthru
      _
    // Predicated region
    $region22: #{multi_relation_net_forward.1} parent=1 // pred_check
      _
    $region23: #{multi_relation_net_forward.1} parent=1 // pred_check_branch
      %57 = sbr.rel (0) target = $region25
    $region24: #{multi_relation_net_forward.1} parent=1 // pred_region
      %s59 = ssub.s32 1024, 1024
      %60 = vsyncadd [#allocation9], %s59
      %s61 = sshll.u32 [#allocation8], 4
      %s62 = int_to_ptr.vmem [resolvable:$true] %s61
      %67 = dma.hbm_to_vmem [thread:$0]  %s5, 1024, %s62, [#allocation9], 64, 64, 4
    $region25: #{multi_relation_net_forward.1} parent=1 // pred_fallthru
      _
    // Predicated region
    $region26: #{multi_relation_net_forward.1} parent=1 // pred_check
      _
    $region27: #{multi_relation_net_forward.1} parent=1 // pred_check_branch
      %69 = sbr.rel (0) target = $region29
    $region28: #{multi_relation_net_forward.1} parent=1 // pred_region
      _
    $region29: #{multi_relation_net_forward.1} parent=1 // pred_fallthru
      _
    // Predicated region
    $region30: #{multi_relation_net_forward.1} parent=1 // pred_check
      _
    $region31: #{multi_relation_net_forward.1} parent=1 // pred_check_branch
      %71 = sbr.rel (0) target = $region33
    $region32: #{multi_relation_net_forward.1} parent=1 // pred_region
      %s73 = ssub.s32 1024, 1024
      %74 = vsyncadd [#allocation9], %s73
      %s75 = sshll.u32 [#allocation10], 4
      %s76 = int_to_ptr.vmem [resolvable:$true] %s75
      %81 = dma.hbm_to_vmem [thread:$0]  %s7, 1024, %s76, [#allocation9], 64, 64, 4
    $region33: #{multi_relation_net_forward.1} parent=1 // pred_fallthru
      _
    // Predicated region
    $region34: #{multi_relation_net_forward.1} parent=1 // pred_check
      _
    $region35: #{multi_relation_net_forward.1} parent=1 // pred_check_branch
      %83 = sbr.rel (0) target = $region37
    $region36: #{multi_relation_net_forward.1} parent=1 // pred_region
      _
    $region37: #{multi_relation_net_forward.1} parent=1 // pred_fallthru
      _
    // Predicated region
    $region38: #{multi_relation_net_forward.1} parent=1 // pred_check
      _
    $region39: #{multi_relation_net_forward.1} parent=1 // pred_check_branch
      %85 = sbr.rel (0) target = $region41
    $region40: #{multi_relation_net_forward.1} parent=1 // pred_region
      %86 = dma.done [#allocation3], 576
    $region41: #{multi_relation_net_forward.1} parent=1 // pred_fallthru
      _
    // Predicated region
    $region42: #{multi_relation_net_forward.1} parent=1 // pred_check
      _
    $region43: #{multi_relation_net_forward.1} parent=1 // pred_check_branch
      %88 = sbr.rel (0) target = $region45
    $region44: #{multi_relation_net_forward.1} parent=1 // pred_region
      %89 = dma.done [#allocation6], 9216
    $region45: #{multi_relation_net_forward.1} parent=1 // pred_fallthru
      _
    // Predicated region
    $region46: #{multi_relation_net_forward.1} parent=1 // pred_check
      _
    $region47: #{multi_relation_net_forward.1} parent=1 // pred_check_branch
      %91 = sbr.rel (0) target = $region49
    $region48: #{multi_relation_net_forward.1} parent=1 // pred_region
      %92 = dma.done [#allocation6], 1024
    $region49: #{multi_relation_net_forward.1} parent=1 // pred_fallthru
      _
    // Predicated region
    $region50: #{multi_relation_net_forward.1} parent=1 // pred_check
      _
    $region51: #{multi_relation_net_forward.1} parent=1 // pred_check_branch
      %94 = sbr.rel (0) target = $region53
    $region52: #{multi_relation_net_forward.1} parent=1 // pred_region
      %95 = dma.done [#allocation9], 1024
    $region53: #{multi_relation_net_forward.1} parent=1 // pred_fallthru
      _
    // Predicated region
    $region54: #{multi_relation_net_forward.1} parent=1 // pred_check
      _
    $region55: #{multi_relation_net_forward.1} parent=1 // pred_check_branch
      %97 = sbr.rel (0) target = $region57
    $region56: #{multi_relation_net_forward.1} parent=1 // pred_region
      %98 = dma.done [#allocation9], 1024
    $region57: #{multi_relation_net_forward.1} parent=1 // pred_fallthru
      _
    %v100 = vld [vmem:[#allocation2] sm:$0xff]
    %v101 = vld [vmem:[#allocation2 + $0x8] sm:$0xff]
    %v102 = vld [vmem:[#allocation2 + $0x10] sm:$0xff]
    %v103 = vld [vmem:[#allocation2 + $0x18] sm:$0xff]
    %v104 = vld [vmem:[#allocation2 + $0x20] sm:$0xf]
    %v105 = vld [vmem:[#allocation5] sm:$0xf]
    %v106 = vld [vmem:[#allocation5 + $0x4] sm:$0xf]
    %v107 = vld [vmem:[#allocation5 + $0x8] sm:$0xf]
    %v108 = vld [vmem:[#allocation5 + $0xc] sm:$0xf]
    %v109 = vld [vmem:[#allocation5 + $0x10] sm:$0xf]
    %v110 = vld [vmem:[#allocation5 + $0x14] sm:$0xf]
    %v111 = vld [vmem:[#allocation5 + $0x18] sm:$0xf]
    %v112 = vld [vmem:[#allocation5 + $0x1c] sm:$0xf]
    %v113 = vld [vmem:[#allocation5 + $0x20] sm:$0xf]
    %v114 = vld [vmem:[#allocation5 + $0x24] sm:$0xf]
    %v115 = vld [vmem:[#allocation5 + $0x28] sm:$0xf]
    %v116 = vld [vmem:[#allocation5 + $0x2c] sm:$0xf]
    %v117 = vld [vmem:[#allocation5 + $0x30] sm:$0xf]
    %v118 = vld [vmem:[#allocation5 + $0x34] sm:$0xf]
    %v119 = vld [vmem:[#allocation5 + $0x38] sm:$0xf]
    %v120 = vld [vmem:[#allocation5 + $0x3c] sm:$0xf]
    %v121 = vld [vmem:[#allocation5 + $0x40] sm:$0xf]
    %v122 = vld [vmem:[#allocation5 + $0x44] sm:$0xf]
    %v123 = vld [vmem:[#allocation5 + $0x48] sm:$0xf]
    %v124 = vld [vmem:[#allocation5 + $0x4c] sm:$0xf]
    %v125 = vld [vmem:[#allocation5 + $0x50] sm:$0xf]
    %v126 = vld [vmem:[#allocation5 + $0x54] sm:$0xf]
    %v127 = vld [vmem:[#allocation5 + $0x58] sm:$0xf]
    %v128 = vld [vmem:[#allocation5 + $0x5c] sm:$0xf]
    %v129 = vld [vmem:[#allocation5 + $0x60] sm:$0xf]
    %v130 = vld [vmem:[#allocation5 + $0x64] sm:$0xf]
    %v131 = vld [vmem:[#allocation5 + $0x68] sm:$0xf]
    %v132 = vld [vmem:[#allocation5 + $0x6c] sm:$0xf]
    %v133 = vld [vmem:[#allocation5 + $0x70] sm:$0xf]
    %v134 = vld [vmem:[#allocation5 + $0x74] sm:$0xf]
    %v135 = vld [vmem:[#allocation5 + $0x78] sm:$0xf]
    %v136 = vld [vmem:[#allocation5 + $0x7c] sm:$0xf]
    %v137 = vld [vmem:[#allocation5 + $0x80] sm:$0xf]
    %v138 = vld [vmem:[#allocation5 + $0x84] sm:$0xf]
    %v139 = vld [vmem:[#allocation5 + $0x88] sm:$0xf]
    %v140 = vld [vmem:[#allocation5 + $0x8c] sm:$0xf]
    %v141 = vld [vmem:[#allocation5 + $0x90] sm:$0xf]
    %v142 = vld [vmem:[#allocation5 + $0x94] sm:$0xf]
    %v143 = vld [vmem:[#allocation5 + $0x98] sm:$0xf]
    %v144 = vld [vmem:[#allocation5 + $0x9c] sm:$0xf]
    %v145 = vld [vmem:[#allocation5 + $0xa0] sm:$0xf]
    %v146 = vld [vmem:[#allocation5 + $0xa4] sm:$0xf]
    %v147 = vld [vmem:[#allocation5 + $0xa8] sm:$0xf]
    %v148 = vld [vmem:[#allocation5 + $0xac] sm:$0xf]
    %v149 = vld [vmem:[#allocation5 + $0xb0] sm:$0xf]
    %v150 = vld [vmem:[#allocation5 + $0xb4] sm:$0xf]
    %v151 = vld [vmem:[#allocation5 + $0xb8] sm:$0xf]
    %v152 = vld [vmem:[#allocation5 + $0xbc] sm:$0xf]
    %v153 = vld [vmem:[#allocation5 + $0xc0] sm:$0xf]
    %v154 = vld [vmem:[#allocation5 + $0xc4] sm:$0xf]
    %v155 = vld [vmem:[#allocation5 + $0xc8] sm:$0xf]
    %v156 = vld [vmem:[#allocation5 + $0xcc] sm:$0xf]
    %v157 = vld [vmem:[#allocation5 + $0xd0] sm:$0xf]
    %v158 = vld [vmem:[#allocation5 + $0xd4] sm:$0xf]
    %v159 = vld [vmem:[#allocation5 + $0xd8] sm:$0xf]
    %v160 = vld [vmem:[#allocation5 + $0xdc] sm:$0xf]
    %v161 = vld [vmem:[#allocation5 + $0xe0] sm:$0xf]
    %v162 = vld [vmem:[#allocation5 + $0xe4] sm:$0xf]
    %v163 = vld [vmem:[#allocation5 + $0xe8] sm:$0xf]
    %v164 = vld [vmem:[#allocation5 + $0xec] sm:$0xf]
    %v165 = vld [vmem:[#allocation5 + $0xf0] sm:$0xf]
    %v166 = vld [vmem:[#allocation5 + $0xf4] sm:$0xf]
    %v167 = vld [vmem:[#allocation5 + $0xf8] sm:$0xf]
    %v168 = vld [vmem:[#allocation5 + $0xfc] sm:$0xf]
    %v169 = vld [vmem:[#allocation5 + $0x100] sm:$0xf]
    %v170 = vld [vmem:[#allocation5 + $0x104] sm:$0xf]
    %v171 = vld [vmem:[#allocation5 + $0x108] sm:$0xf]
    %v172 = vld [vmem:[#allocation5 + $0x10c] sm:$0xf]
    %v173 = vld [vmem:[#allocation5 + $0x110] sm:$0xf]
    %v174 = vld [vmem:[#allocation5 + $0x114] sm:$0xf]
    %v175 = vld [vmem:[#allocation5 + $0x118] sm:$0xf]
    %v176 = vld [vmem:[#allocation5 + $0x11c] sm:$0xf]
    %v177 = vld [vmem:[#allocation5 + $0x120] sm:$0xf]
    %v178 = vld [vmem:[#allocation5 + $0x124] sm:$0xf]
    %v179 = vld [vmem:[#allocation5 + $0x128] sm:$0xf]
    %v180 = vld [vmem:[#allocation5 + $0x12c] sm:$0xf]
    %v181 = vld [vmem:[#allocation5 + $0x130] sm:$0xf]
    %v182 = vld [vmem:[#allocation5 + $0x134] sm:$0xf]
    %v183 = vld [vmem:[#allocation5 + $0x138] sm:$0xf]
    %v184 = vld [vmem:[#allocation5 + $0x13c] sm:$0xf]
    %v185 = vld [vmem:[#allocation5 + $0x140] sm:$0xf]
    %v186 = vld [vmem:[#allocation5 + $0x144] sm:$0xf]
    %v187 = vld [vmem:[#allocation5 + $0x148] sm:$0xf]
    %v188 = vld [vmem:[#allocation5 + $0x14c] sm:$0xf]
    %v189 = vld [vmem:[#allocation5 + $0x150] sm:$0xf]
    %v190 = vld [vmem:[#allocation5 + $0x154] sm:$0xf]
    %v191 = vld [vmem:[#allocation5 + $0x158] sm:$0xf]
    %v192 = vld [vmem:[#allocation5 + $0x15c] sm:$0xf]
    %v193 = vld [vmem:[#allocation5 + $0x160] sm:$0xf]
    %v194 = vld [vmem:[#allocation5 + $0x164] sm:$0xf]
    %v195 = vld [vmem:[#allocation5 + $0x168] sm:$0xf]
    %v196 = vld [vmem:[#allocation5 + $0x16c] sm:$0xf]
    %v197 = vld [vmem:[#allocation5 + $0x170] sm:$0xf]
    %v198 = vld [vmem:[#allocation5 + $0x174] sm:$0xf]
    %v199 = vld [vmem:[#allocation5 + $0x178] sm:$0xf]
    %v200 = vld [vmem:[#allocation5 + $0x17c] sm:$0xf]
    %v201 = vld [vmem:[#allocation5 + $0x180] sm:$0xf]
    %v202 = vld [vmem:[#allocation5 + $0x184] sm:$0xf]
    %v203 = vld [vmem:[#allocation5 + $0x188] sm:$0xf]
    %v204 = vld [vmem:[#allocation5 + $0x18c] sm:$0xf]
    %v205 = vld [vmem:[#allocation5 + $0x190] sm:$0xf]
    %v206 = vld [vmem:[#allocation5 + $0x194] sm:$0xf]
    %v207 = vld [vmem:[#allocation5 + $0x198] sm:$0xf]
    %v208 = vld [vmem:[#allocation5 + $0x19c] sm:$0xf]
    %v209 = vld [vmem:[#allocation5 + $0x1a0] sm:$0xf]
    %v210 = vld [vmem:[#allocation5 + $0x1a4] sm:$0xf]
    %v211 = vld [vmem:[#allocation5 + $0x1a8] sm:$0xf]
    %v212 = vld [vmem:[#allocation5 + $0x1ac] sm:$0xf]
    %v213 = vld [vmem:[#allocation5 + $0x1b0] sm:$0xf]
    %v214 = vld [vmem:[#allocation5 + $0x1b4] sm:$0xf]
    %v215 = vld [vmem:[#allocation5 + $0x1b8] sm:$0xf]
    %v216 = vld [vmem:[#allocation5 + $0x1bc] sm:$0xf]
    %v217 = vld [vmem:[#allocation5 + $0x1c0] sm:$0xf]
    %v218 = vld [vmem:[#allocation5 + $0x1c4] sm:$0xf]
    %v219 = vld [vmem:[#allocation5 + $0x1c8] sm:$0xf]
    %v220 = vld [vmem:[#allocation5 + $0x1cc] sm:$0xf]
    %v221 = vld [vmem:[#allocation5 + $0x1d0] sm:$0xf]
    %v222 = vld [vmem:[#allocation5 + $0x1d4] sm:$0xf]
    %v223 = vld [vmem:[#allocation5 + $0x1d8] sm:$0xf]
    %v224 = vld [vmem:[#allocation5 + $0x1dc] sm:$0xf]
    %v225 = vld [vmem:[#allocation5 + $0x1e0] sm:$0xf]
    %v226 = vld [vmem:[#allocation5 + $0x1e4] sm:$0xf]
    %v227 = vld [vmem:[#allocation5 + $0x1e8] sm:$0xf]
    %v228 = vld [vmem:[#allocation5 + $0x1ec] sm:$0xf]
    %v229 = vld [vmem:[#allocation5 + $0x1f0] sm:$0xf]
    %v230 = vld [vmem:[#allocation5 + $0x1f4] sm:$0xf]
    %v231 = vld [vmem:[#allocation5 + $0x1f8] sm:$0xf]
    %v232 = vld [vmem:[#allocation5 + $0x1fc] sm:$0xf]
    %v233 = vld [vmem:[#allocation5 + $0x200] sm:$0xf]
    %v234 = vld [vmem:[#allocation5 + $0x204] sm:$0xf]
    %v235 = vld [vmem:[#allocation5 + $0x208] sm:$0xf]
    %v236 = vld [vmem:[#allocation5 + $0x20c] sm:$0xf]
    %v237 = vld [vmem:[#allocation5 + $0x210] sm:$0xf]
    %v238 = vld [vmem:[#allocation5 + $0x214] sm:$0xf]
    %v239 = vld [vmem:[#allocation5 + $0x218] sm:$0xf]
    %v240 = vld [vmem:[#allocation5 + $0x21c] sm:$0xf]
    %v241 = vld [vmem:[#allocation5 + $0x220] sm:$0xf]
    %v242 = vld [vmem:[#allocation5 + $0x224] sm:$0xf]
    %v243 = vld [vmem:[#allocation5 + $0x228] sm:$0xf]
    %v244 = vld [vmem:[#allocation5 + $0x22c] sm:$0xf]
    %v245 = vld [vmem:[#allocation5 + $0x230] sm:$0xf]
    %v246 = vld [vmem:[#allocation5 + $0x234] sm:$0xf]
    %v247 = vld [vmem:[#allocation5 + $0x238] sm:$0xf]
    %v248 = vld [vmem:[#allocation5 + $0x23c] sm:$0xf]
    %v249 = vld [vmem:[%s2] sm:$0x1]
    %v251 = vlaneseq
    %v252 = vshrl.u32 %v251, 7
    %v253 = vsub.s32 0, %v252
    %v254 = vrot.slane %v249, %v253
    %v261 = vunpack.c.l.b16 %v100
    %v262 = vunpack.c.h.b16 %v100
    %v263 = vunpack.c.l.b16 %v101
    %v264 = vunpack.c.h.b16 %v101
    %v265 = vunpack.c.l.b16 %v102
    %v266 = vunpack.c.h.b16 %v102
    %v267 = vunpack.c.l.b16 %v103
    %v268 = vunpack.c.h.b16 %v103
    %v269 = vunpack.c.l.b16 %v104
    %v270 = vpack.c.b16 %v261, %v261
    %v271 = vpack.c.b16 %v262, %v262
    %v272 = vpack.c.b16 %v263, %v263
    %v273 = vpack.c.b16 %v264, %v264
    %v274 = vpack.c.b16 %v265, %v265
    %v275 = vpack.c.b16 %v266, %v266
    %v276 = vpack.c.b16 %v267, %v267
    %v277 = vpack.c.b16 %v268, %v268
    %v278 = vpack.c.b16 %v269, %v269
    %v432 = vunpack.c.l.b16 %v105
    %v433 = vunpack.c.l.b16 %v106
    %v434 = vunpack.c.l.b16 %v107
    %v435 = vunpack.c.l.b16 %v108
    %v436 = vunpack.c.l.b16 %v109
    %v437 = vunpack.c.l.b16 %v110
    %v438 = vunpack.c.l.b16 %v111
    %v439 = vunpack.c.l.b16 %v112
    %v440 = vunpack.c.l.b16 %v113
    %v441 = vunpack.c.l.b16 %v114
    %v442 = vunpack.c.l.b16 %v115
    %v443 = vunpack.c.l.b16 %v116
    %v444 = vunpack.c.l.b16 %v117
    %v445 = vunpack.c.l.b16 %v118
    %v446 = vunpack.c.l.b16 %v119
    %v447 = vunpack.c.l.b16 %v120
    %v448 = vunpack.c.l.b16 %v121
    %v449 = vunpack.c.l.b16 %v122
    %v450 = vunpack.c.l.b16 %v123
    %v451 = vunpack.c.l.b16 %v124
    %v452 = vunpack.c.l.b16 %v125
    %v453 = vunpack.c.l.b16 %v126
    %v454 = vunpack.c.l.b16 %v127
    %v455 = vunpack.c.l.b16 %v128
    %v456 = vunpack.c.l.b16 %v129
    %v457 = vunpack.c.l.b16 %v130
    %v458 = vunpack.c.l.b16 %v131
    %v459 = vunpack.c.l.b16 %v132
    %v460 = vunpack.c.l.b16 %v133
    %v461 = vunpack.c.l.b16 %v134
    %v462 = vunpack.c.l.b16 %v135
    %v463 = vunpack.c.l.b16 %v136
    %v464 = vunpack.c.l.b16 %v137
    %v465 = vunpack.c.l.b16 %v138
    %v466 = vunpack.c.l.b16 %v139
    %v467 = vunpack.c.l.b16 %v140
    %v468 = vunpack.c.l.b16 %v141
    %v469 = vunpack.c.l.b16 %v142
    %v470 = vunpack.c.l.b16 %v143
    %v471 = vunpack.c.l.b16 %v144
    %v472 = vunpack.c.l.b16 %v145
    %v473 = vunpack.c.l.b16 %v146
    %v474 = vunpack.c.l.b16 %v147
    %v475 = vunpack.c.l.b16 %v148
    %v476 = vunpack.c.l.b16 %v149
    %v477 = vunpack.c.l.b16 %v150
    %v478 = vunpack.c.l.b16 %v151
    %v479 = vunpack.c.l.b16 %v152
    %v480 = vunpack.c.l.b16 %v153
    %v481 = vunpack.c.l.b16 %v154
    %v482 = vunpack.c.l.b16 %v155
    %v483 = vunpack.c.l.b16 %v156
    %v484 = vunpack.c.l.b16 %v157
    %v485 = vunpack.c.l.b16 %v158
    %v486 = vunpack.c.l.b16 %v159
    %v487 = vunpack.c.l.b16 %v160
    %v488 = vunpack.c.l.b16 %v161
    %v489 = vunpack.c.l.b16 %v162
    %v490 = vunpack.c.l.b16 %v163
    %v491 = vunpack.c.l.b16 %v164
    %v492 = vunpack.c.l.b16 %v165
    %v493 = vunpack.c.l.b16 %v166
    %v494 = vunpack.c.l.b16 %v167
    %v495 = vunpack.c.l.b16 %v168
    %v496 = vunpack.c.l.b16 %v169
    %v497 = vunpack.c.l.b16 %v170
    %v498 = vunpack.c.l.b16 %v171
    %v499 = vunpack.c.l.b16 %v172
    %v500 = vunpack.c.l.b16 %v173
    %v501 = vunpack.c.l.b16 %v174
    %v502 = vunpack.c.l.b16 %v175
    %v503 = vunpack.c.l.b16 %v176
    %v504 = vunpack.c.l.b16 %v177
    %v505 = vunpack.c.l.b16 %v178
    %v506 = vunpack.c.l.b16 %v179
    %v507 = vunpack.c.l.b16 %v180
    %v508 = vunpack.c.l.b16 %v181
    %v509 = vunpack.c.l.b16 %v182
    %v510 = vunpack.c.l.b16 %v183
    %v511 = vunpack.c.l.b16 %v184
    %v512 = vunpack.c.l.b16 %v185
    %v513 = vunpack.c.l.b16 %v186
    %v514 = vunpack.c.l.b16 %v187
    %v515 = vunpack.c.l.b16 %v188
    %v516 = vunpack.c.l.b16 %v189
    %v517 = vunpack.c.l.b16 %v190
    %v518 = vunpack.c.l.b16 %v191
    %v519 = vunpack.c.l.b16 %v192
    %v520 = vunpack.c.l.b16 %v193
    %v521 = vunpack.c.l.b16 %v194
    %v522 = vunpack.c.l.b16 %v195
    %v523 = vunpack.c.l.b16 %v196
    %v524 = vunpack.c.l.b16 %v197
    %v525 = vunpack.c.l.b16 %v198
    %v526 = vunpack.c.l.b16 %v199
    %v527 = vunpack.c.l.b16 %v200
    %v528 = vunpack.c.l.b16 %v201
    %v529 = vunpack.c.l.b16 %v202
    %v530 = vunpack.c.l.b16 %v203
    %v531 = vunpack.c.l.b16 %v204
    %v532 = vunpack.c.l.b16 %v205
    %v533 = vunpack.c.l.b16 %v206
    %v534 = vunpack.c.l.b16 %v207
    %v535 = vunpack.c.l.b16 %v208
    %v536 = vunpack.c.l.b16 %v209
    %v537 = vunpack.c.l.b16 %v210
    %v538 = vunpack.c.l.b16 %v211
    %v539 = vunpack.c.l.b16 %v212
    %v540 = vunpack.c.l.b16 %v213
    %v541 = vunpack.c.l.b16 %v214
    %v542 = vunpack.c.l.b16 %v215
    %v543 = vunpack.c.l.b16 %v216
    %v544 = vunpack.c.l.b16 %v217
    %v545 = vunpack.c.l.b16 %v218
    %v546 = vunpack.c.l.b16 %v219
    %v547 = vunpack.c.l.b16 %v220
    %v548 = vunpack.c.l.b16 %v221
    %v549 = vunpack.c.l.b16 %v222
    %v550 = vunpack.c.l.b16 %v223
    %v551 = vunpack.c.l.b16 %v224
    %v552 = vunpack.c.l.b16 %v225
    %v553 = vunpack.c.l.b16 %v226
    %v554 = vunpack.c.l.b16 %v227
    %v555 = vunpack.c.l.b16 %v228
    %v556 = vunpack.c.l.b16 %v229
    %v557 = vunpack.c.l.b16 %v230
    %v558 = vunpack.c.l.b16 %v231
    %v559 = vunpack.c.l.b16 %v232
    %v560 = vunpack.c.l.b16 %v233
    %v561 = vunpack.c.l.b16 %v234
    %v562 = vunpack.c.l.b16 %v235
    %v563 = vunpack.c.l.b16 %v236
    %v564 = vunpack.c.l.b16 %v237
    %v565 = vunpack.c.l.b16 %v238
    %v566 = vunpack.c.l.b16 %v239
    %v567 = vunpack.c.l.b16 %v240
    %v568 = vunpack.c.l.b16 %v241
    %v569 = vunpack.c.l.b16 %v242
    %v570 = vunpack.c.l.b16 %v243
    %v571 = vunpack.c.l.b16 %v244
    %v572 = vunpack.c.l.b16 %v245
    %v573 = vunpack.c.l.b16 %v246
    %v574 = vunpack.c.l.b16 %v247
    %v575 = vunpack.c.l.b16 %v248
    %v576 = vpack.c.b16 %v433, %v432
    %v577 = vpack.c.b16 %v435, %v434
    %v578 = vpack.c.b16 %v437, %v436
    %v579 = vpack.c.b16 %v439, %v438
    %v580 = vpack.c.b16 %v441, %v440
    %v581 = vpack.c.b16 %v443, %v442
    %v582 = vpack.c.b16 %v445, %v444
    %v583 = vpack.c.b16 %v447, %v446
    %v584 = vpack.c.b16 %v449, %v448
    %v585 = vpack.c.b16 %v451, %v450
    %v586 = vpack.c.b16 %v453, %v452
    %v587 = vpack.c.b16 %v455, %v454
    %v588 = vpack.c.b16 %v457, %v456
    %v589 = vpack.c.b16 %v459, %v458
    %v590 = vpack.c.b16 %v461, %v460
    %v591 = vpack.c.b16 %v463, %v462
    %v592 = vpack.c.b16 %v465, %v464
    %v593 = vpack.c.b16 %v467, %v466
    %v594 = vpack.c.b16 %v469, %v468
    %v595 = vpack.c.b16 %v471, %v470
    %v596 = vpack.c.b16 %v473, %v472
    %v597 = vpack.c.b16 %v475, %v474
    %v598 = vpack.c.b16 %v477, %v476
    %v599 = vpack.c.b16 %v479, %v478
    %v600 = vpack.c.b16 %v481, %v480
    %v601 = vpack.c.b16 %v483, %v482
    %v602 = vpack.c.b16 %v485, %v484
    %v603 = vpack.c.b16 %v487, %v486
    %v604 = vpack.c.b16 %v489, %v488
    %v605 = vpack.c.b16 %v491, %v490
    %v606 = vpack.c.b16 %v493, %v492
    %v607 = vpack.c.b16 %v495, %v494
    %v608 = vpack.c.b16 %v497, %v496
    %v609 = vpack.c.b16 %v499, %v498
    %v610 = vpack.c.b16 %v501, %v500
    %v611 = vpack.c.b16 %v503, %v502
    %v612 = vpack.c.b16 %v505, %v504
    %v613 = vpack.c.b16 %v507, %v506
    %v614 = vpack.c.b16 %v509, %v508
    %v615 = vpack.c.b16 %v511, %v510
    %v616 = vpack.c.b16 %v513, %v512
    %v617 = vpack.c.b16 %v515, %v514
    %v618 = vpack.c.b16 %v517, %v516
    %v619 = vpack.c.b16 %v519, %v518
    %v620 = vpack.c.b16 %v521, %v520
    %v621 = vpack.c.b16 %v523, %v522
    %v622 = vpack.c.b16 %v525, %v524
    %v623 = vpack.c.b16 %v527, %v526
    %v624 = vpack.c.b16 %v529, %v528
    %v625 = vpack.c.b16 %v531, %v530
    %v626 = vpack.c.b16 %v533, %v532
    %v627 = vpack.c.b16 %v535, %v534
    %v628 = vpack.c.b16 %v537, %v536
    %v629 = vpack.c.b16 %v539, %v538
    %v630 = vpack.c.b16 %v541, %v540
    %v631 = vpack.c.b16 %v543, %v542
    %v632 = vpack.c.b16 %v545, %v544
    %v633 = vpack.c.b16 %v547, %v546
    %v634 = vpack.c.b16 %v549, %v548
    %v635 = vpack.c.b16 %v551, %v550
    %v636 = vpack.c.b16 %v553, %v552
    %v637 = vpack.c.b16 %v555, %v554
    %v638 = vpack.c.b16 %v557, %v556
    %v639 = vpack.c.b16 %v559, %v558
    %v640 = vpack.c.b16 %v561, %v560
    %v641 = vpack.c.b16 %v563, %v562
    %v642 = vpack.c.b16 %v565, %v564
    %v643 = vpack.c.b16 %v567, %v566
    %v644 = vpack.c.b16 %v569, %v568
    %v645 = vpack.c.b16 %v571, %v570
    %v646 = vpack.c.b16 %v573, %v572
    %v647 = vpack.c.b16 %v575, %v574
    %720 = vmatprep.subr.bf16.mxu0 0
    %721 = vmatpush1.bf16.msra.mxu0 %v576
    %722 = vmatprep.subr.bf16.mxu0 0
    %723 = vmatpush1.bf16.msra.mxu0 %v577
    %724 = vmatprep.subr.bf16.mxu0 0
    %725 = vmatpush1.bf16.msra.mxu0 %v578
    %726 = vmatprep.subr.bf16.mxu0 0
    %727 = vmatpush1.bf16.msra.mxu0 %v579
    %728 = vmatprep.subr.bf16.mxu0 0
    %729 = vmatpush1.bf16.msra.mxu0 %v580
    %730 = vmatprep.subr.bf16.mxu0 0
    %731 = vmatpush1.bf16.msra.mxu0 %v581
    %732 = vmatprep.subr.bf16.mxu0 0
    %733 = vmatpush1.bf16.msra.mxu0 %v582
    %734 = vmatprep.subr.bf16.mxu0 0
    %735 = vmatpush1.bf16.msra.mxu0 %v583
    %736 = vmatprep.subr.bf16.mxu0 0
    %737 = vmatpush1.bf16.msra.mxu0 %v584
    %738 = vmatprep.subr.bf16.mxu0 0
    %739 = vmatpush1.bf16.msra.mxu0 %v585
    %740 = vmatprep.subr.bf16.mxu0 0
    %741 = vmatpush1.bf16.msra.mxu0 %v586
    %742 = vmatprep.subr.bf16.mxu0 0
    %743 = vmatpush1.bf16.msra.mxu0 %v587
    %744 = vmatprep.subr.bf16.mxu0 0
    %745 = vmatpush1.bf16.msra.mxu0 %v588
    %746 = vmatprep.subr.bf16.mxu0 0
    %747 = vmatpush1.bf16.msra.mxu0 %v589
    %748 = vmatprep.subr.bf16.mxu0 0
    %749 = vmatpush1.bf16.msra.mxu0 %v590
    %750 = vmatprep.subr.bf16.mxu0 0
    %751 = vmatpush1.bf16.msra.mxu0 %v591
    %752 = vmatprep.mubr.bf16.mxu0 %v271
    %753 = vmatmul.mubr.bf16.gmra.mrb[0].mxu0 %v270
    %v754 = vpop.f32.mrb[0].mxu0
    %v755 = vadd.f32 %v254, %v754
    %v756 = vpop.f32.mrb[0].mxu0
    %v757 = vpop.f32.mrb[0].mxu0
    %v758 = vpop.f32.mrb[0].mxu0
    %759 = vdwg.mxu0
    %760 = vmatprep.subr.bf16.mxu0 0
    %761 = vmatpush1.bf16.msra.mxu0 %v592
    %762 = vmatprep.subr.bf16.mxu0 0
    %763 = vmatpush1.bf16.msra.mxu0 %v593
    %764 = vmatprep.subr.bf16.mxu0 0
    %765 = vmatpush1.bf16.msra.mxu0 %v594
    %766 = vmatprep.subr.bf16.mxu0 0
    %767 = vmatpush1.bf16.msra.mxu0 %v595
    %768 = vmatprep.subr.bf16.mxu0 0
    %769 = vmatpush1.bf16.msra.mxu0 %v596
    %770 = vmatprep.subr.bf16.mxu0 0
    %771 = vmatpush1.bf16.msra.mxu0 %v597
    %772 = vmatprep.subr.bf16.mxu0 0
    %773 = vmatpush1.bf16.msra.mxu0 %v598
    %774 = vmatprep.subr.bf16.mxu0 0
    %775 = vmatpush1.bf16.msra.mxu0 %v599
    %776 = vmatprep.subr.bf16.mxu0 0
    %777 = vmatpush1.bf16.msra.mxu0 %v600
    %778 = vmatprep.subr.bf16.mxu0 0
    %779 = vmatpush1.bf16.msra.mxu0 %v601
    %780 = vmatprep.subr.bf16.mxu0 0
    %781 = vmatpush1.bf16.msra.mxu0 %v602
    %782 = vmatprep.subr.bf16.mxu0 0
    %783 = vmatpush1.bf16.msra.mxu0 %v603
    %784 = vmatprep.subr.bf16.mxu0 0
    %785 = vmatpush1.bf16.msra.mxu0 %v604
    %786 = vmatprep.subr.bf16.mxu0 0
    %787 = vmatpush1.bf16.msra.mxu0 %v605
    %788 = vmatprep.subr.bf16.mxu0 0
    %789 = vmatpush1.bf16.msra.mxu0 %v606
    %790 = vmatprep.subr.bf16.mxu0 0
    %791 = vmatpush1.bf16.msra.mxu0 %v607
    %792 = vmatprep.mubr.bf16.mxu0 %v273
    %793 = vmatmul.mubr.bf16.gmra.mrb[0].mxu0 %v272
    %v794 = vpop.f32.mrb[0].mxu0
    %v795 = vadd.f32 %v755, %v794
    %v796 = vpop.f32.mrb[0].mxu0
    %v797 = vpop.f32.mrb[0].mxu0
    %v798 = vpop.f32.mrb[0].mxu0
    %799 = vdwg.mxu0
    %800 = vmatprep.subr.bf16.mxu0 0
    %801 = vmatpush1.bf16.msra.mxu0 %v608
    %802 = vmatprep.subr.bf16.mxu0 0
    %803 = vmatpush1.bf16.msra.mxu0 %v609
    %804 = vmatprep.subr.bf16.mxu0 0
    %805 = vmatpush1.bf16.msra.mxu0 %v610
    %806 = vmatprep.subr.bf16.mxu0 0
    %807 = vmatpush1.bf16.msra.mxu0 %v611
    %808 = vmatprep.subr.bf16.mxu0 0
    %809 = vmatpush1.bf16.msra.mxu0 %v612
    %810 = vmatprep.subr.bf16.mxu0 0
    %811 = vmatpush1.bf16.msra.mxu0 %v613
    %812 = vmatprep.subr.bf16.mxu0 0
    %813 = vmatpush1.bf16.msra.mxu0 %v614
    %814 = vmatprep.subr.bf16.mxu0 0
    %815 = vmatpush1.bf16.msra.mxu0 %v615
    %816 = vmatprep.subr.bf16.mxu0 0
    %817 = vmatpush1.bf16.msra.mxu0 %v616
    %818 = vmatprep.subr.bf16.mxu0 0
    %819 = vmatpush1.bf16.msra.mxu0 %v617
    %820 = vmatprep.subr.bf16.mxu0 0
    %821 = vmatpush1.bf16.msra.mxu0 %v618
    %822 = vmatprep.subr.bf16.mxu0 0
    %823 = vmatpush1.bf16.msra.mxu0 %v619
    %824 = vmatprep.subr.bf16.mxu0 0
    %825 = vmatpush1.bf16.msra.mxu0 %v620
    %826 = vmatprep.subr.bf16.mxu0 0
    %827 = vmatpush1.bf16.msra.mxu0 %v621
    %828 = vmatprep.subr.bf16.mxu0 0
    %829 = vmatpush1.bf16.msra.mxu0 %v622
    %830 = vmatprep.subr.bf16.mxu0 0
    %831 = vmatpush1.bf16.msra.mxu0 %v623
    %832 = vmatprep.mubr.bf16.mxu0 %v275
    %833 = vmatmul.mubr.bf16.gmra.mrb[0].mxu0 %v274
    %v834 = vpop.f32.mrb[0].mxu0
    %v835 = vadd.f32 %v795, %v834
    %v836 = vpop.f32.mrb[0].mxu0
    %v837 = vpop.f32.mrb[0].mxu0
    %v838 = vpop.f32.mrb[0].mxu0
    %839 = vdwg.mxu0
    %840 = vmatprep.subr.bf16.mxu0 0
    %841 = vmatpush1.bf16.msra.mxu0 %v624
    %842 = vmatprep.subr.bf16.mxu0 0
    %843 = vmatpush1.bf16.msra.mxu0 %v625
    %844 = vmatprep.subr.bf16.mxu0 0
    %845 = vmatpush1.bf16.msra.mxu0 %v626
    %846 = vmatprep.subr.bf16.mxu0 0
    %847 = vmatpush1.bf16.msra.mxu0 %v627
    %848 = vmatprep.subr.bf16.mxu0 0
    %849 = vmatpush1.bf16.msra.mxu0 %v628
    %850 = vmatprep.subr.bf16.mxu0 0
    %851 = vmatpush1.bf16.msra.mxu0 %v629
    %852 = vmatprep.subr.bf16.mxu0 0
    %853 = vmatpush1.bf16.msra.mxu0 %v630
    %854 = vmatprep.subr.bf16.mxu0 0
    %855 = vmatpush1.bf16.msra.mxu0 %v631
    %856 = vmatprep.subr.bf16.mxu0 0
    %857 = vmatpush1.bf16.msra.mxu0 %v632
    %858 = vmatprep.subr.bf16.mxu0 0
    %859 = vmatpush1.bf16.msra.mxu0 %v633
    %860 = vmatprep.subr.bf16.mxu0 0
    %861 = vmatpush1.bf16.msra.mxu0 %v634
    %862 = vmatprep.subr.bf16.mxu0 0
    %863 = vmatpush1.bf16.msra.mxu0 %v635
    %864 = vmatprep.subr.bf16.mxu0 0
    %865 = vmatpush1.bf16.msra.mxu0 %v636
    %866 = vmatprep.subr.bf16.mxu0 0
    %867 = vmatpush1.bf16.msra.mxu0 %v637
    %868 = vmatprep.subr.bf16.mxu0 0
    %869 = vmatpush1.bf16.msra.mxu0 %v638
    %870 = vmatprep.subr.bf16.mxu0 0
    %871 = vmatpush1.bf16.msra.mxu0 %v639
    %872 = vmatprep.mubr.bf16.mxu0 %v277
    %873 = vmatmul.mubr.bf16.gmra.mrb[0].mxu0 %v276
    %v874 = vpop.f32.mrb[0].mxu0
    %v875 = vadd.f32 %v835, %v874
    %v876 = vpop.f32.mrb[0].mxu0
    %v877 = vpop.f32.mrb[0].mxu0
    %v878 = vpop.f32.mrb[0].mxu0
    %879 = vdwg.mxu0
    %880 = vmatprep.subr.bf16.mxu0 0
    %881 = vmatpush1.bf16.msra.mxu0 %v640
    %882 = vmatprep.subr.bf16.mxu0 0
    %883 = vmatpush1.bf16.msra.mxu0 %v641
    %884 = vmatprep.subr.bf16.mxu0 0
    %885 = vmatpush1.bf16.msra.mxu0 %v642
    %886 = vmatprep.subr.bf16.mxu0 0
    %887 = vmatpush1.bf16.msra.mxu0 %v643
    %888 = vmatprep.subr.bf16.mxu0 0
    %889 = vmatpush1.bf16.msra.mxu0 %v644
    %890 = vmatprep.subr.bf16.mxu0 0
    %891 = vmatpush1.bf16.msra.mxu0 %v645
    %892 = vmatprep.subr.bf16.mxu0 0
    %893 = vmatpush1.bf16.msra.mxu0 %v646
    %894 = vmatprep.subr.bf16.mxu0 0
    %895 = vmatpush1.bf16.msra.mxu0 %v647
    %896 = vmatprep.subr.bf16.mxu0 0
    %897 = vmatpush1.bf16.msra.mxu0 0
    %898 = vmatprep.subr.bf16.mxu0 0
    %899 = vmatpush1.bf16.msra.mxu0 0
    %900 = vmatprep.subr.bf16.mxu0 0
    %901 = vmatpush1.bf16.msra.mxu0 0
    %902 = vmatprep.subr.bf16.mxu0 0
    %903 = vmatpush1.bf16.msra.mxu0 0
    %904 = vmatprep.subr.bf16.mxu0 0
    %905 = vmatpush1.bf16.msra.mxu0 0
    %906 = vmatprep.subr.bf16.mxu0 0
    %907 = vmatpush1.bf16.msra.mxu0 0
    %908 = vmatprep.subr.bf16.mxu0 0
    %909 = vmatpush1.bf16.msra.mxu0 0
    %910 = vmatprep.subr.bf16.mxu0 0
    %911 = vmatpush1.bf16.msra.mxu0 0
    %912 = vmatprep.mubr.bf16.mxu0 0
    %913 = vmatmul.mubr.bf16.gmra.mrb[0].mxu0 %v278
    %v914 = vpop.f32.mrb[0].mxu0
    %v915 = vadd.f32 %v875, %v914
    %v916 = vpop.f32.mrb[0].mxu0
    %v917 = vpop.f32.mrb[0].mxu0
    %v918 = vpop.f32.mrb[0].mxu0
    %919 = vdwg.mxu0
    %v920 = vmax.f32 %v915, 0.0
    %v921 = vpack.c.bf16 %v920, %v920
    %v922 = vld [vmem:[#allocation7] sm:$0xf]
    %v923 = vld [vmem:[#allocation7 + $0x4] sm:$0xf]
    %v924 = vld [vmem:[#allocation7 + $0x8] sm:$0xf]
    %v925 = vld [vmem:[#allocation7 + $0xc] sm:$0xf]
    %v926 = vld [vmem:[#allocation7 + $0x10] sm:$0xf]
    %v927 = vld [vmem:[#allocation7 + $0x14] sm:$0xf]
    %v928 = vld [vmem:[#allocation7 + $0x18] sm:$0xf]
    %v929 = vld [vmem:[#allocation7 + $0x1c] sm:$0xf]
    %v930 = vld [vmem:[#allocation7 + $0x20] sm:$0xf]
    %v931 = vld [vmem:[#allocation7 + $0x24] sm:$0xf]
    %v932 = vld [vmem:[#allocation7 + $0x28] sm:$0xf]
    %v933 = vld [vmem:[#allocation7 + $0x2c] sm:$0xf]
    %v934 = vld [vmem:[#allocation7 + $0x30] sm:$0xf]
    %v935 = vld [vmem:[#allocation7 + $0x34] sm:$0xf]
    %v936 = vld [vmem:[#allocation7 + $0x38] sm:$0xf]
    %v937 = vld [vmem:[#allocation7 + $0x3c] sm:$0xf]
    %v938 = vld [vmem:[%s4] sm:$0x1]
    %v940 = vlaneseq
    %v941 = vshrl.u32 %v940, 7
    %v942 = vsub.s32 0, %v941
    %v943 = vrot.slane %v938, %v942
    %v961 = vunpack.c.l.b16 %v922
    %v962 = vunpack.c.l.b16 %v923
    %v963 = vunpack.c.l.b16 %v924
    %v964 = vunpack.c.l.b16 %v925
    %v965 = vunpack.c.l.b16 %v926
    %v966 = vunpack.c.l.b16 %v927
    %v967 = vunpack.c.l.b16 %v928
    %v968 = vunpack.c.l.b16 %v929
    %v969 = vunpack.c.l.b16 %v930
    %v970 = vunpack.c.l.b16 %v931
    %v971 = vunpack.c.l.b16 %v932
    %v972 = vunpack.c.l.b16 %v933
    %v973 = vunpack.c.l.b16 %v934
    %v974 = vunpack.c.l.b16 %v935
    %v975 = vunpack.c.l.b16 %v936
    %v976 = vunpack.c.l.b16 %v937
    %v977 = vpack.c.b16 %v962, %v961
    %v978 = vpack.c.b16 %v964, %v963
    %v979 = vpack.c.b16 %v966, %v965
    %v980 = vpack.c.b16 %v968, %v967
    %v981 = vpack.c.b16 %v970, %v969
    %v982 = vpack.c.b16 %v972, %v971
    %v983 = vpack.c.b16 %v974, %v973
    %v984 = vpack.c.b16 %v976, %v975
    %993 = vmatprep.subr.bf16.mxu0 0
    %994 = vmatpush1.bf16.msra.mxu0 %v977
    %995 = vmatprep.subr.bf16.mxu0 0
    %996 = vmatpush1.bf16.msra.mxu0 %v978
    %997 = vmatprep.subr.bf16.mxu0 0
    %998 = vmatpush1.bf16.msra.mxu0 %v979
    %999 = vmatprep.subr.bf16.mxu0 0
    %1000 = vmatpush1.bf16.msra.mxu0 %v980
    %1001 = vmatprep.subr.bf16.mxu0 0
    %1002 = vmatpush1.bf16.msra.mxu0 %v981
    %1003 = vmatprep.subr.bf16.mxu0 0
    %1004 = vmatpush1.bf16.msra.mxu0 %v982
    %1005 = vmatprep.subr.bf16.mxu0 0
    %1006 = vmatpush1.bf16.msra.mxu0 %v983
    %1007 = vmatprep.subr.bf16.mxu0 0
    %1008 = vmatpush1.bf16.msra.mxu0 %v984
    %1009 = vmatprep.subr.bf16.mxu0 0
    %1010 = vmatpush1.bf16.msra.mxu0 0
    %1011 = vmatprep.subr.bf16.mxu0 0
    %1012 = vmatpush1.bf16.msra.mxu0 0
    %1013 = vmatprep.subr.bf16.mxu0 0
    %1014 = vmatpush1.bf16.msra.mxu0 0
    %1015 = vmatprep.subr.bf16.mxu0 0
    %1016 = vmatpush1.bf16.msra.mxu0 0
    %1017 = vmatprep.subr.bf16.mxu0 0
    %1018 = vmatpush1.bf16.msra.mxu0 0
    %1019 = vmatprep.subr.bf16.mxu0 0
    %1020 = vmatpush1.bf16.msra.mxu0 0
    %1021 = vmatprep.subr.bf16.mxu0 0
    %1022 = vmatpush1.bf16.msra.mxu0 0
    %1023 = vmatprep.subr.bf16.mxu0 0
    %1024 = vmatpush1.bf16.msra.mxu0 0
    %1025 = vmatprep.mubr.bf16.mxu0 0
    %1026 = vmatmul.mubr.bf16.gmra.mrb[0].mxu0 %v921
    %v1027 = vpop.f32.mrb[0].mxu0
    %v1028 = vadd.f32 %v943, %v1027
    %v1029 = vpop.f32.mrb[0].mxu0
    %v1030 = vpop.f32.mrb[0].mxu0
    %v1031 = vpop.f32.mrb[0].mxu0
    %1032 = vdwg.mxu0
    %v1033 = vmax.f32 %v1028, 0.0
    %v1034 = vpack.c.bf16 %v1033, %v1033
    %v1035 = vld [vmem:[#allocation8] sm:$0xf]
    %v1036 = vld [vmem:[#allocation8 + $0x4] sm:$0xf]
    %v1037 = vld [vmem:[#allocation8 + $0x8] sm:$0xf]
    %v1038 = vld [vmem:[#allocation8 + $0xc] sm:$0xf]
    %v1039 = vld [vmem:[#allocation8 + $0x10] sm:$0xf]
    %v1040 = vld [vmem:[#allocation8 + $0x14] sm:$0xf]
    %v1041 = vld [vmem:[#allocation8 + $0x18] sm:$0xf]
    %v1042 = vld [vmem:[#allocation8 + $0x1c] sm:$0xf]
    %v1043 = vld [vmem:[#allocation8 + $0x20] sm:$0xf]
    %v1044 = vld [vmem:[#allocation8 + $0x24] sm:$0xf]
    %v1045 = vld [vmem:[#allocation8 + $0x28] sm:$0xf]
    %v1046 = vld [vmem:[#allocation8 + $0x2c] sm:$0xf]
    %v1047 = vld [vmem:[#allocation8 + $0x30] sm:$0xf]
    %v1048 = vld [vmem:[#allocation8 + $0x34] sm:$0xf]
    %v1049 = vld [vmem:[#allocation8 + $0x38] sm:$0xf]
    %v1050 = vld [vmem:[#allocation8 + $0x3c] sm:$0xf]
    %v1051 = vld [vmem:[%s6] sm:$0x1]
    %v1053 = vlaneseq
    %v1054 = vshrl.u32 %v1053, 7
    %v1055 = vsub.s32 0, %v1054
    %v1056 = vrot.slane %v1051, %v1055
    %v1074 = vunpack.c.l.b16 %v1035
    %v1075 = vunpack.c.l.b16 %v1036
    %v1076 = vunpack.c.l.b16 %v1037
    %v1077 = vunpack.c.l.b16 %v1038
    %v1078 = vunpack.c.l.b16 %v1039
    %v1079 = vunpack.c.l.b16 %v1040
    %v1080 = vunpack.c.l.b16 %v1041
    %v1081 = vunpack.c.l.b16 %v1042
    %v1082 = vunpack.c.l.b16 %v1043
    %v1083 = vunpack.c.l.b16 %v1044
    %v1084 = vunpack.c.l.b16 %v1045
    %v1085 = vunpack.c.l.b16 %v1046
    %v1086 = vunpack.c.l.b16 %v1047
    %v1087 = vunpack.c.l.b16 %v1048
    %v1088 = vunpack.c.l.b16 %v1049
    %v1089 = vunpack.c.l.b16 %v1050
    %v1090 = vpack.c.b16 %v1075, %v1074
    %v1091 = vpack.c.b16 %v1077, %v1076
    %v1092 = vpack.c.b16 %v1079, %v1078
    %v1093 = vpack.c.b16 %v1081, %v1080
    %v1094 = vpack.c.b16 %v1083, %v1082
    %v1095 = vpack.c.b16 %v1085, %v1084
    %v1096 = vpack.c.b16 %v1087, %v1086
    %v1097 = vpack.c.b16 %v1089, %v1088
    %1106 = vmatprep.subr.bf16.mxu0 0
    %1107 = vmatpush1.bf16.msra.mxu0 %v1090
    %1108 = vmatprep.subr.bf16.mxu0 0
    %1109 = vmatpush1.bf16.msra.mxu0 %v1091
    %1110 = vmatprep.subr.bf16.mxu0 0
    %1111 = vmatpush1.bf16.msra.mxu0 %v1092
    %1112 = vmatprep.subr.bf16.mxu0 0
    %1113 = vmatpush1.bf16.msra.mxu0 %v1093
    %1114 = vmatprep.subr.bf16.mxu0 0
    %1115 = vmatpush1.bf16.msra.mxu0 %v1094
    %1116 = vmatprep.subr.bf16.mxu0 0
    %1117 = vmatpush1.bf16.msra.mxu0 %v1095
    %1118 = vmatprep.subr.bf16.mxu0 0
    %1119 = vmatpush1.bf16.msra.mxu0 %v1096
    %1120 = vmatprep.subr.bf16.mxu0 0
    %1121 = vmatpush1.bf16.msra.mxu0 %v1097
    %1122 = vmatprep.subr.bf16.mxu0 0
    %1123 = vmatpush1.bf16.msra.mxu0 0
    %1124 = vmatprep.subr.bf16.mxu0 0
    %1125 = vmatpush1.bf16.msra.mxu0 0
    %1126 = vmatprep.subr.bf16.mxu0 0
    %1127 = vmatpush1.bf16.msra.mxu0 0
    %1128 = vmatprep.subr.bf16.mxu0 0
    %1129 = vmatpush1.bf16.msra.mxu0 0
    %1130 = vmatprep.subr.bf16.mxu0 0
    %1131 = vmatpush1.bf16.msra.mxu0 0
    %1132 = vmatprep.subr.bf16.mxu0 0
    %1133 = vmatpush1.bf16.msra.mxu0 0
    %1134 = vmatprep.subr.bf16.mxu0 0
    %1135 = vmatpush1.bf16.msra.mxu0 0
    %1136 = vmatprep.subr.bf16.mxu0 0
    %1137 = vmatpush1.bf16.msra.mxu0 0
    %1138 = vmatprep.mubr.bf16.mxu0 0
    %1139 = vmatmul.mubr.bf16.gmra.mrb[0].mxu0 %v1034
    %v1140 = vpop.f32.mrb[0].mxu0
    %v1141 = vadd.f32 %v1056, %v1140
    %v1142 = vpop.f32.mrb[0].mxu0
    %v1143 = vpop.f32.mrb[0].mxu0
    %v1144 = vpop.f32.mrb[0].mxu0
    %1145 = vdwg.mxu0
    %v1146 = vmax.f32 %v1141, 0.0
    %v1147 = vpack.c.bf16 %v1146, %v1146
    %v1148 = vld [vmem:[#allocation10] sm:$0xf]
    %v1149 = vld [vmem:[#allocation10 + $0x4] sm:$0xf]
    %v1150 = vld [vmem:[#allocation10 + $0x8] sm:$0xf]
    %v1151 = vld [vmem:[#allocation10 + $0xc] sm:$0xf]
    %v1152 = vld [vmem:[#allocation10 + $0x10] sm:$0xf]
    %v1153 = vld [vmem:[#allocation10 + $0x14] sm:$0xf]
    %v1154 = vld [vmem:[#allocation10 + $0x18] sm:$0xf]
    %v1155 = vld [vmem:[#allocation10 + $0x1c] sm:$0xf]
    %v1156 = vld [vmem:[#allocation10 + $0x20] sm:$0xf]
    %v1157 = vld [vmem:[#allocation10 + $0x24] sm:$0xf]
    %v1158 = vld [vmem:[#allocation10 + $0x28] sm:$0xf]
    %v1159 = vld [vmem:[#allocation10 + $0x2c] sm:$0xf]
    %v1160 = vld [vmem:[#allocation10 + $0x30] sm:$0xf]
    %v1161 = vld [vmem:[#allocation10 + $0x34] sm:$0xf]
    %v1162 = vld [vmem:[#allocation10 + $0x38] sm:$0xf]
    %v1163 = vld [vmem:[#allocation10 + $0x3c] sm:$0xf]
    %v1164 = vld [vmem:[%s8] sm:$0x1]
    %v1166 = vlaneseq
    %v1167 = vshrl.u32 %v1166, 7
    %v1168 = vsub.s32 0, %v1167
    %v1169 = vrot.slane %v1164, %v1168
    %v1187 = vunpack.c.l.b16 %v1148
    %v1188 = vunpack.c.l.b16 %v1149
    %v1189 = vunpack.c.l.b16 %v1150
    %v1190 = vunpack.c.l.b16 %v1151
    %v1191 = vunpack.c.l.b16 %v1152
    %v1192 = vunpack.c.l.b16 %v1153
    %v1193 = vunpack.c.l.b16 %v1154
    %v1194 = vunpack.c.l.b16 %v1155
    %v1195 = vunpack.c.l.b16 %v1156
    %v1196 = vunpack.c.l.b16 %v1157
    %v1197 = vunpack.c.l.b16 %v1158
    %v1198 = vunpack.c.l.b16 %v1159
    %v1199 = vunpack.c.l.b16 %v1160
    %v1200 = vunpack.c.l.b16 %v1161
    %v1201 = vunpack.c.l.b16 %v1162
    %v1202 = vunpack.c.l.b16 %v1163
    %v1203 = vpack.c.b16 %v1188, %v1187
    %v1204 = vpack.c.b16 %v1190, %v1189
    %v1205 = vpack.c.b16 %v1192, %v1191
    %v1206 = vpack.c.b16 %v1194, %v1193
    %v1207 = vpack.c.b16 %v1196, %v1195
    %v1208 = vpack.c.b16 %v1198, %v1197
    %v1209 = vpack.c.b16 %v1200, %v1199
    %v1210 = vpack.c.b16 %v1202, %v1201
    %1219 = vmatprep.subr.bf16.mxu0 0
    %1220 = vmatpush1.bf16.msra.mxu0 %v1203
    %1221 = vmatprep.subr.bf16.mxu0 0
    %1222 = vmatpush1.bf16.msra.mxu0 %v1204
    %1223 = vmatprep.subr.bf16.mxu0 0
    %1224 = vmatpush1.bf16.msra.mxu0 %v1205
    %1225 = vmatprep.subr.bf16.mxu0 0
    %1226 = vmatpush1.bf16.msra.mxu0 %v1206
    %1227 = vmatprep.subr.bf16.mxu0 0
    %1228 = vmatpush1.bf16.msra.mxu0 %v1207
    %1229 = vmatprep.subr.bf16.mxu0 0
    %1230 = vmatpush1.bf16.msra.mxu0 %v1208
    %1231 = vmatprep.subr.bf16.mxu0 0
    %1232 = vmatpush1.bf16.msra.mxu0 %v1209
    %1233 = vmatprep.subr.bf16.mxu0 0
    %1234 = vmatpush1.bf16.msra.mxu0 %v1210
    %1235 = vmatprep.subr.bf16.mxu0 0
    %1236 = vmatpush1.bf16.msra.mxu0 0
    %1237 = vmatprep.subr.bf16.mxu0 0
    %1238 = vmatpush1.bf16.msra.mxu0 0
    %1239 = vmatprep.subr.bf16.mxu0 0
    %1240 = vmatpush1.bf16.msra.mxu0 0
    %1241 = vmatprep.subr.bf16.mxu0 0
    %1242 = vmatpush1.bf16.msra.mxu0 0
    %1243 = vmatprep.subr.bf16.mxu0 0
    %1244 = vmatpush1.bf16.msra.mxu0 0
    %1245 = vmatprep.subr.bf16.mxu0 0
    %1246 = vmatpush1.bf16.msra.mxu0 0
    %1247 = vmatprep.subr.bf16.mxu0 0
    %1248 = vmatpush1.bf16.msra.mxu0 0
    %1249 = vmatprep.subr.bf16.mxu0 0
    %1250 = vmatpush1.bf16.msra.mxu0 0
    %1251 = vmatprep.mubr.bf16.mxu0 0
    %1252 = vmatmul.mubr.bf16.gmra.mrb[0].mxu0 %v1147
    %v1253 = vpop.f32.mrb[0].mxu0
    %v1254 = vadd.f32 %v1169, %v1253
    %v1255 = vpop.f32.mrb[0].mxu0
    %v1256 = vpop.f32.mrb[0].mxu0
    %v1257 = vpop.f32.mrb[0].mxu0
    %1258 = vdwg.mxu0
    %v1259 = vpack.c.bf16 %v1254, %v1254
    %1260 = vst [vmem:[#allocation11] sm:$0xf] %v1259
    // Predicated region
    $region58: #{multi_relation_net_forward.1} parent=1 // pred_check
      _
    $region59: #{multi_relation_net_forward.1} parent=1 // pred_check_branch
      %1262 = sbr.rel (0) target = $region61
    $region60: #{multi_relation_net_forward.1} parent=1 // pred_region
      %s1264 = ssub.s32 64, 64
      %1265 = vsyncadd [#allocation4], %s1264
      %s1267 = sshll.u32 [#allocation11], 4
      %s1268 = int_to_ptr.vmem [resolvable:$true] %s1267
      %1270 = dma.vmem_to_hbm [thread:$0]  %s1268, 64, %s9, [#allocation4]
    $region61: #{multi_relation_net_forward.1} parent=1 // pred_fallthru
      _
    // Predicated region
    $region62: #{multi_relation_net_forward.1} parent=1 // pred_check
      _
    $region63: #{multi_relation_net_forward.1} parent=1 // pred_check_branch
      %1272 = sbr.rel (0) target = $region65
    $region64: #{multi_relation_net_forward.1} parent=1 // pred_region
      %1273 = dma.done [#allocation4], 64
    $region65: #{multi_relation_net_forward.1} parent=1 // pred_fallthru
      _
    %1274 = vsyncpa [#allocation3], 1
    %1275 = vsyncpa [#allocation6], 1
    %1276 = vsyncpa [#allocation9], 1
    %1277 = vsyncpa [#allocation4], 1

</llo_original>
